<compile_context>
chip_gen: v5e
topology: v5e:2x2
jax: 0.10.0
libtpu: 0.0.40
codegen_flags: <defaults>
</compile_context>

<pallas_src>
import jax
import jax.numpy as jnp
from jax.experimental import pallas as pl
from jax.experimental.pallas import tpu as pltpu


def affine_kernel(x_ref, w_ref, b_ref, o_ref):
    # x_ref: [N, 1] in VMEM; w_ref, b_ref: [1, 1] scalars in SMEM; o_ref: [N, 1].
    w = w_ref[0, 0]           # scalar load from SMEM
    b = b_ref[0, 0]           # scalar load from SMEM
    # Single VPU broadcast multiply-add; no MXU, no transpose.
    o_ref[...] = x_ref[...] * w + b


def linear_forward(x, weight, bias):
    """y = x @ weight.T + bias for nn.Linear(1, 1) semantics (IN=OUT=1)."""
    n, in_f = x.shape
    out_f, _ = weight.shape
    assert in_f == 1 and out_f == 1, "specialized VPU path for Linear(1, 1)"

    w2d = weight.reshape(1, 1).astype(jnp.float32)
    b2d = bias.reshape(1, 1).astype(jnp.float32)

    return pl.pallas_call(
        affine_kernel,
        out_shape=jax.ShapeDtypeStruct((n, out_f), x.dtype),
        in_specs=[
            # x: single full-array block in VMEM (block_shape == array dims,
            # so the (8,128) tiling constraint does not apply).
            pl.BlockSpec((n, in_f), lambda: (0, 0)),
            # weight / bias: 4-byte scalars -> SMEM, read via scalar loads.
            pl.BlockSpec(memory_space=pltpu.MemorySpace.SMEM),
            pl.BlockSpec(memory_space=pltpu.MemorySpace.SMEM),
        ],
        out_specs=pl.BlockSpec((n, out_f), lambda: (0, 0)),
    )(x, w2d, b2d)


if __name__ == "__main__":
    key = jax.random.PRNGKey(0)
    k_w, k_b = jax.random.split(key)

    # nn.Linear(1, 1): weight [1, 1], bias [1], deterministic init
    # (uniform in [-1, 1] ~ PyTorch's default bound for fan_in=1).
    weight = jax.random.uniform(k_w, (1, 1), jnp.float32, minval=-1.0, maxval=1.0)
    bias = jax.random.uniform(k_b, (1,), jnp.float32, minval=-1.0, maxval=1.0)

    # Inputs mirroring the PyTorch script: x = [[0.0], [0.1], ..., [0.9]]
    x = jnp.arange(10, dtype=jnp.float32).reshape(10, 1) * 0.1
    # and x_data = [[p]] with p = 0.1
    x_data = jnp.array([[0.1]], dtype=jnp.float32)

    y = linear_forward(x, weight, bias)
    y_pred = linear_forward(x_data, weight, bias)
    jax.block_until_ready((y, y_pred))

    # Sanity check against plain JAX reference (torch.nn.Linear semantics).
    ref_y = x @ weight.T + bias
    ref_yp = x_data @ weight.T + bias
    assert jnp.allclose(y, ref_y, atol=1e-6), "mismatch on batch input"
    assert jnp.allclose(y_pred, ref_yp, atol=1e-6), "mismatch on single input"

    print("KERNEL_OK")
</pallas_src>

<mosaic_0001>
module attributes {stable_mosaic.version = 11 : i64} {
  func.func @affine_kernel(%arg0: memref<10x1xf32, #tpu.memory_space<vmem>>, %arg1: memref<1x1xf32, #tpu.memory_space<smem>>, %arg2: memref<1x1xf32, #tpu.memory_space<smem>>, %arg3: memref<10x1xf32, #tpu.memory_space<vmem>>) attributes {dimension_semantics = [], scalar_prefetch = 0 : i64, scratch_operands = 0 : i64, tpu.core_type = #tpu.core_type<tc>} {
    %c0 = arith.constant 0 : index
    %c0_0 = arith.constant 0 : index
    %0 = memref.load %arg1[%c0, %c0_0] : memref<1x1xf32, #tpu.memory_space<smem>>
    %c0_1 = arith.constant 0 : index
    %c0_2 = arith.constant 0 : index
    %1 = memref.load %arg2[%c0_1, %c0_2] : memref<1x1xf32, #tpu.memory_space<smem>>
    %c0_3 = arith.constant 0 : index
    %c0_4 = arith.constant 0 : index
    %2 = vector.load %arg0[%c0_3, %c0_4] : memref<10x1xf32, #tpu.memory_space<vmem>>, vector<10x1xf32>
    %3 = vector.broadcast %0 : f32 to vector<10x1xf32>
    %4 = arith.mulf %2, %3 : vector<10x1xf32>
    %5 = vector.broadcast %1 : f32 to vector<10x1xf32>
    %6 = arith.addf %4, %5 : vector<10x1xf32>
    %c0_5 = arith.constant 0 : index
    %c0_6 = arith.constant 0 : index
    %7 = vector.load %arg3[%c0_5, %c0_6] : memref<10x1xf32, #tpu.memory_space<vmem>>, vector<10x1xf32>
    tpu.vector_store %arg3[%c0_5, %c0_6], %6 {strides = array<i32>} : memref<10x1xf32, #tpu.memory_space<vmem>>, vector<10x1xf32>,
    return
  }
}

</mosaic_0001>

<llo_original>
// kernel: tpu_custom_call.1
$region0: #{tpu_custom_call.1}
  #allocation0 [shape = 'u32[]', space=smem, size = 0x4, offset = 0x4, fixed_abs, tag = 'smem constant byte address 0x4 - core index']
  #allocation1 [shape = 'u32[72,128]{1,0:T(1,128)}', space=vmem, size = 0x9000, scoped, tag = 'internal scratch']
  #allocation2 [shape = 'f32[1,1]{1,0:T(1,128)S(6)}', space=smem, size = 0x200, scoped, tag = 'scoped memory for tpu_custom_call.1']
  #allocation3 [shape = 'f32[1,1]{1,0:T(1,128)S(6)}', space=smem, size = 0x200, scoped, tag = 'scoped memory for tpu_custom_call.1']
  %s0 = inlined_call_operand.vmem [shape: f32[10,1], index: 0, kind: input, shape index: {}]
  %s1 = inlined_call_operand.<no memory space> [shape: f32[1,1], index: 1, kind: input, shape index: {}]
  %s2 = inlined_call_operand.<no memory space> [shape: f32[1,1], index: 2, kind: input, shape index: {}]
  %s3 = inlined_call_operand.vmem [shape: f32[10,1], index: 3, kind: output, shape index: {}]
  %s4 = sld [smem:[#allocation0]]
  $region22: #{tpu_custom_call.1} parent=0
    _
  %s6 = ssub.s32 1, %s4
  %s7 = scalar_select 0, %s6, %s4
  %8 = sst [smem:[#allocation2]] %s1
  %9 = sst [smem:[#allocation3]] %s2
  // Predicated region
  $region2: #{tpu_custom_call.1} parent=0 // pred_check
    _
  $region3: #{tpu_custom_call.1} parent=0 // pred_check_branch
    %11 = sbr.rel (0) target = $region5
  $region4: #{tpu_custom_call.1} parent=0 // pred_region
    _
  $region5: #{tpu_custom_call.1} parent=0 // pred_fallthru
    _
  // Predicated region
  $region6: #{tpu_custom_call.1} parent=0 // pred_check
    _
  $region7: #{tpu_custom_call.1} parent=0 // pred_check_branch
    %13 = sbr.rel (0) target = $region9
  $region8: #{tpu_custom_call.1} parent=0 // pred_region
    _
  $region9: #{tpu_custom_call.1} parent=0 // pred_fallthru
    _
  // Predicated region
  $region10: #{tpu_custom_call.1} parent=0 // pred_check
    _
  $region11: #{tpu_custom_call.1} parent=0 // pred_check_branch
    %15 = sbr.rel (0) target = $region13
  $region12: #{tpu_custom_call.1} parent=0 // pred_region
    _
  $region13: #{tpu_custom_call.1} parent=0 // pred_fallthru
    _
  %s16 = sld [smem:[#allocation2]]
  %s17 = sld [smem:[#allocation3]]
  %v18 = vld [vmem:[%s0] sm:$0xff]
  %v19 = vld [vmem:[%s0 + $0x8] sm:$0x3]
  %v20 = vstv %s16
  %v21 = vmul.f32 %v18, %v20
  %v22 = vmul.f32 %v19, %v20
  %v23 = vstv %s17
  %v24 = vadd.f32 %v21, %v23
  %v25 = vadd.f32 %v22, %v23
  %vm26 = vcmask 7168
  %27 = vst.msk [vmem:[%s3] sm:$0xff] %vm26, %v24
  %vm28 = vcmask 1024
  %29 = vst.msk [vmem:[%s3 + $0x8] sm:$0x3] %vm28, %v25
  // Predicated region
  $region14: #{tpu_custom_call.1} parent=0 // pred_check
    _
  $region15: #{tpu_custom_call.1} parent=0 // pred_check_branch
    %31 = sbr.rel (0) target = $region17
  $region16: #{tpu_custom_call.1} parent=0 // pred_region
    _
  $region17: #{tpu_custom_call.1} parent=0 // pred_fallthru
    _
  // Predicated region
  $region18: #{tpu_custom_call.1} parent=0 // pred_check
    _
  $region19: #{tpu_custom_call.1} parent=0 // pred_check_branch
    %33 = sbr.rel (0) target = $region21
  $region20: #{tpu_custom_call.1} parent=0 // pred_region
    _
  $region21: #{tpu_custom_call.1} parent=0 // pred_fallthru
    _

</llo_original>
